<compile_context>
chip_gen: v7x
topology: tpu7x:2x2x1
jax: 0.10.0
libtpu: 0.0.40
codegen_flags: <defaults>
</compile_context>

<pallas_src>
import functools

import jax
import jax.numpy as jnp
from jax.experimental import pallas as pl
from jax.experimental.pallas import tpu as pltpu


# ----------------------------------------------------------------------------
# Kernels
# ----------------------------------------------------------------------------
def _bn_ncl_kernel(x_ref, gamma_ref, beta_ref, o_ref, *, eps):
    # x_ref/o_ref: (N, TILE_C, L)   gamma_ref/beta_ref: (1, TILE_C, 1)
    # Per-channel reduction over the N (outer) and L (lane) axes.
    xf = x_ref[...].astype(jnp.float32)  # f32 accumulation (no-op for f32 inputs)
    n, _, l = xf.shape
    inv_count = 1.0 / (n * l)

    mean = jnp.sum(xf, axis=(0, 2), keepdims=True) * inv_count       # (1, TILE_C, 1)
    xc = xf - mean
    var = jnp.sum(xc * xc, axis=(0, 2), keepdims=True) * inv_count   # biased variance
    inv_std = jax.lax.rsqrt(var + eps)

    # Fused affine: one per-channel scale, one multiply-add over the block.
    scale = gamma_ref[...].astype(jnp.float32) * inv_std              # (1, TILE_C, 1)
    o_ref[...] = (xc * scale + beta_ref[...].astype(jnp.float32)).astype(o_ref.dtype)


def _bn_nc_kernel(x_ref, gamma_ref, beta_ref, o_ref, *, eps):
    # x_ref/o_ref: (N, TILE_C)   gamma_ref/beta_ref: (1, TILE_C)
    # Channels live on the lane axis; reduce over the sublane (N) axis.
    xf = x_ref[...].astype(jnp.float32)
    n = xf.shape[0]
    inv_count = 1.0 / n

    mean = jnp.sum(xf, axis=0, keepdims=True) * inv_count             # (1, TILE_C)
    xc = xf - mean
    var = jnp.sum(xc * xc, axis=0, keepdims=True) * inv_count
    inv_std = jax.lax.rsqrt(var + eps)

    scale = gamma_ref[...].astype(jnp.float32) * inv_std
    o_ref[...] = (xc * scale + beta_ref[...].astype(jnp.float32)).astype(o_ref.dtype)


# ----------------------------------------------------------------------------
# Tiling helpers
# ----------------------------------------------------------------------------
_VMEM_BUDGET_BYTES = 24 << 20  # conservative: double-buffered tiles must fit on v5e..v7x


def _choose_tile_c_sublane(c, n, l, itemsize):
    """Largest multiple-of-8 channel tile dividing C (channels on the sublane axis) that
    keeps double-buffered in+out tiles plus f32 temporaries under the VMEM budget."""
    per_chan = n * l * (4 * itemsize + 8)  # 2x(in+out) double-buffered + ~2 f32 temps
    if c <= 8 or c % 8 != 0:
        return c  # tiny / irregular channel counts: one full-extent tile (sublane padding ok)
    best = 8
    tile = 8
    while tile <= c:
        if c % tile == 0 and tile * per_chan <= _VMEM_BUDGET_BYTES:
            best = tile
        tile += 8
    return best


def _choose_tile_c_lane(c, n, itemsize):
    """Largest multiple-of-128 channel tile dividing C (channels on the lane axis) that
    keeps double-buffered in+out tiles plus f32 temporaries under the VMEM budget."""
    per_chan = n * (4 * itemsize + 8)
    if c <= 128 or c % 128 != 0:
        return c
    best = 128
    tile = 128
    while tile <= c:
        if c % tile == 0 and tile * per_chan <= _VMEM_BUDGET_BYTES:
            best = tile
        tile += 128
    return best


_COMPILER_PARAMS = pltpu.CompilerParams(
    dimension_semantics=("parallel",),  # channel tiles are independent -> megacore-shardable
    vmem_limit_bytes=48 << 20,          # headroom under v7x's 64 MiB physical VMEM
)


# ----------------------------------------------------------------------------
# Wrappers
# ----------------------------------------------------------------------------
def batchnorm_channels_pallas(x3d, gamma, beta, eps=1e-5):
    """Training-mode batch norm on an (N, C, L) slab: per-channel stats over (N, L)."""
    n, c, l = x3d.shape
    g3d = gamma.reshape(1, c, 1).astype(jnp.float32)
    b3d = beta.reshape(1, c, 1).astype(jnp.float32)

    tile_c = _choose_tile_c_sublane(c, n, l, jnp.dtype(x3d.dtype).itemsize)
    grid = (pl.cdiv(c, tile_c),)

    return pl.pallas_call(
        functools.partial(_bn_ncl_kernel, eps=eps),
        out_shape=jax.ShapeDtypeStruct((n, c, l), x3d.dtype),
        grid=grid,
        in_specs=[
            pl.BlockSpec((n, tile_c, l), lambda i: (0, i, 0)),
            pl.BlockSpec((1, tile_c, 1), lambda i: (0, i, 0)),
            pl.BlockSpec((1, tile_c, 1), lambda i: (0, i, 0)),
        ],
        out_specs=pl.BlockSpec((n, tile_c, l), lambda i: (0, i, 0)),
        compiler_params=_COMPILER_PARAMS,
    )(x3d, g3d, b3d)


def batchnorm_nc_pallas(x2d, gamma, beta, eps=1e-5):
    """Training-mode BatchNorm1d on an (N, C) input: per-channel stats over N."""
    n, c = x2d.shape
    g2d = gamma.reshape(1, c).astype(jnp.float32)
    b2d = beta.reshape(1, c).astype(jnp.float32)

    tile_c = _choose_tile_c_lane(c, n, jnp.dtype(x2d.dtype).itemsize)
    grid = (pl.cdiv(c, tile_c),)

    return pl.pallas_call(
        functools.partial(_bn_nc_kernel, eps=eps),
        out_shape=jax.ShapeDtypeStruct((n, c), x2d.dtype),
        grid=grid,
        in_specs=[
            pl.BlockSpec((n, tile_c), lambda i: (0, i)),
            pl.BlockSpec((1, tile_c), lambda i: (0, i)),
            pl.BlockSpec((1, tile_c), lambda i: (0, i)),
        ],
        out_specs=pl.BlockSpec((n, tile_c), lambda i: (0, i)),
        compiler_params=_COMPILER_PARAMS,
    )(x2d, g2d, b2d)


def batchnorm2d_pallas(x_nchw, gamma, beta, eps=1e-5):
    """Training-mode BatchNorm2d forward on an NCHW input (no transposes, free reshape)."""
    n, c, h, w = x_nchw.shape
    y3d = batchnorm_channels_pallas(x_nchw.reshape(n, c, h * w), gamma, beta, eps=eps)
    return y3d.reshape(n, c, h, w)


class MultiBatchNorm:
    """JAX port of the PyTorch MultiBatchNorm module (forward pass, training mode)."""

    def __init__(self, num_features, momentum=None, eps=1e-5, dim="2d",
                 types=("base", "aug"), key=None):
        types = list(types)
        assert isinstance(types, list) and len(types) > 1
        assert "base" in types
        assert dim in ("1d", "2d")
        self.types = types
        self.eps = eps
        self.dim = dim
        # One (gamma, beta) pair per BN branch, shapes as in nn.BatchNorm{1,2}d.
        # (Deterministic non-trivial init so the affine path is genuinely exercised;
        #  torch defaults are gamma=1, beta=0 and do not affect forward semantics.)
        key = jax.random.PRNGKey(0) if key is None else key
        self.params = {}
        for i, t in enumerate(types):
            kg, kb = jax.random.split(jax.random.fold_in(key, i))
            gamma = 1.0 + 0.1 * jax.random.normal(kg, (num_features,), dtype=jnp.float32)
            beta = 0.1 * jax.random.normal(kb, (num_features,), dtype=jnp.float32)
            self.params[t] = (gamma, beta)
        self.t = "base"

    def __call__(self, x):
        assert self.t in self.types
        gamma, beta = self.params[self.t]
        if self.dim == "2d":
            out = batchnorm2d_pallas(x, gamma, beta, eps=self.eps)
        else:
            # BatchNorm1d input: (N, C) or (N, C, L).
            if x.ndim == 2:
                out = batchnorm_nc_pallas(x, gamma, beta, eps=self.eps)
            else:
                out = batchnorm_channels_pallas(x, gamma, beta, eps=self.eps)
        self.t = "base"
        return out


# ----------------------------------------------------------------------------
# Pure-JAX references
# ----------------------------------------------------------------------------
def _reference_bn2d(x_nchw, gamma, beta, eps=1e-5):
    mean = jnp.mean(x_nchw, axis=(0, 2, 3), keepdims=True)
    var = jnp.mean((x_nchw - mean) ** 2, axis=(0, 2, 3), keepdims=True)
    g = gamma.reshape(1, -1, 1, 1)
    b = beta.reshape(1, -1, 1, 1)
    return (x_nchw - mean) * jax.lax.rsqrt(var + eps) * g + b


def _reference_bn1d_nc(x_nc, gamma, beta, eps=1e-5):
    mean = jnp.mean(x_nc, axis=0, keepdims=True)
    var = jnp.mean((x_nc - mean) ** 2, axis=0, keepdims=True)
    return (x_nc - mean) * jax.lax.rsqrt(var + eps) * gamma.reshape(1, -1) + beta.reshape(1, -1)


if __name__ == "__main__":
    key = jax.random.PRNGKey(0)
    kx, kp, kx1d, kp1d = jax.random.split(key, 4)

    # --- 2d path (module default): x (N, C, H, W) ---
    N, C, H, W = 2, 4, 16, 16
    x = jax.random.normal(kx, (N, C, H, W), dtype=jnp.float32)

    mbn = MultiBatchNorm(num_features=C, dim="2d", types=["base", "aug"], key=kp)
    out = jax.block_until_ready(mbn(x))

    gamma, beta = mbn.params["base"]
    ref = _reference_bn2d(x, gamma, beta, eps=mbn.eps)
    assert out.shape == (N, C, H, W)
    assert jnp.allclose(out, ref, atol=1e-5, rtol=1e-5), "2d 'base' mismatch vs reference"
    assert mbn.t == "base"

    # Branch selection: 'aug' branch, then reset back to 'base'.
    mbn.t = "aug"
    out_aug = jax.block_until_ready(mbn(x))
    gamma_a, beta_a = mbn.params["aug"]
    ref_aug = _reference_bn2d(x, gamma_a, beta_a, eps=mbn.eps)
    assert jnp.allclose(out_aug, ref_aug, atol=1e-5, rtol=1e-5), "2d 'aug' mismatch vs reference"
    assert mbn.t == "base"

    # --- 1d path: x (N, C) ---
    N1, C1 = 8, 32
    x1d = jax.random.normal(kx1d, (N1, C1), dtype=jnp.float32)
    mbn1d = MultiBatchNorm(num_features=C1, dim="1d", types=["base", "aug"], key=kp1d)
    out1d = jax.block_until_ready(mbn1d(x1d))
    g1, b1 = mbn1d.params["base"]
    ref1d = _reference_bn1d_nc(x1d, g1, b1, eps=mbn1d.eps)
    assert out1d.shape == (N1, C1)
    assert jnp.allclose(out1d, ref1d, atol=1e-5, rtol=1e-5), "1d mismatch vs reference"
    assert mbn1d.t == "base"

    print("KERNEL_OK")
</pallas_src>

<mosaic_0001>
module attributes {stable_mosaic.version = 11 : i64} {
  func.func @_bn_ncl_kernel(%arg0: i32, %arg1: memref<2x4x256xf32, #tpu.memory_space<vmem>>, %arg2: memref<1x4x1xf32, #tpu.memory_space<vmem>>, %arg3: memref<1x4x1xf32, #tpu.memory_space<vmem>>, %arg4: memref<2x4x256xf32, #tpu.memory_space<vmem>>) attributes {dimension_semantics = [#tpu.dimension_semantics<parallel>], iteration_bounds = array<i64: 1>, scalar_prefetch = 0 : i64, scratch_operands = 0 : i64, tpu.core_type = #tpu.core_type<tc>, window_params = [{transform_indices = @transform_0, window_bounds = array<i64: 2, 4, 256>}, {transform_indices = @transform_1, window_bounds = array<i64: 1, 4, 1>}, {transform_indices = @transform_2, window_bounds = array<i64: 1, 4, 1>}, {transform_indices = @transform_3, window_bounds = array<i64: 2, 4, 256>}]} {
    %c0 = arith.constant 0 : index
    %c0_0 = arith.constant 0 : index
    %c0_1 = arith.constant 0 : index
    %0 = vector.load %arg1[%c0, %c0_0, %c0_1] : memref<2x4x256xf32, #tpu.memory_space<vmem>>, vector<2x4x256xf32>
    %cst = arith.constant dense<0.000000e+00> : vector<4xf32>
    %1 = vector.multi_reduction <add>, %0, %cst [0, 2] : vector<2x4x256xf32> to vector<4xf32>
    %2 = vector.shape_cast %1 : vector<4xf32> to vector<1x4x1xf32>
    %cst_2 = arith.constant 0.001953125 : f32
    %3 = vector.broadcast %cst_2 : f32 to vector<1x4x1xf32>
    %4 = arith.mulf %2, %3 : vector<1x4x1xf32>
    %5 = vector.broadcast %4 : vector<1x4x1xf32> to vector<2x4x256xf32>
    %6 = arith.subf %0, %5 : vector<2x4x256xf32>
    %7 = arith.mulf %6, %6 : vector<2x4x256xf32>
    %cst_3 = arith.constant dense<0.000000e+00> : vector<4xf32>
    %8 = vector.multi_reduction <add>, %7, %cst_3 [0, 2] : vector<2x4x256xf32> to vector<4xf32>
    %9 = vector.shape_cast %8 : vector<4xf32> to vector<1x4x1xf32>
    %cst_4 = arith.constant 0.001953125 : f32
    %10 = vector.broadcast %cst_4 : f32 to vector<1x4x1xf32>
    %11 = arith.mulf %9, %10 : vector<1x4x1xf32>
    %cst_5 = arith.constant 9.99999974E-6 : f32
    %12 = vector.broadcast %cst_5 : f32 to vector<1x4x1xf32>
    %13 = arith.addf %11, %12 : vector<1x4x1xf32>
    %14 = math.rsqrt %13 : vector<1x4x1xf32>
    %c0_6 = arith.constant 0 : index
    %c0_7 = arith.constant 0 : index
    %c0_8 = arith.constant 0 : index
    %15 = vector.load %arg2[%c0_6, %c0_7, %c0_8] : memref<1x4x1xf32, #tpu.memory_space<vmem>>, vector<1x4x1xf32>
    %16 = arith.mulf %15, %14 : vector<1x4x1xf32>
    %17 = vector.broadcast %16 : vector<1x4x1xf32> to vector<2x4x256xf32>
    %18 = arith.mulf %6, %17 : vector<2x4x256xf32>
    %c0_9 = arith.constant 0 : index
    %c0_10 = arith.constant 0 : index
    %c0_11 = arith.constant 0 : index
    %19 = vector.load %arg3[%c0_9, %c0_10, %c0_11] : memref<1x4x1xf32, #tpu.memory_space<vmem>>, vector<1x4x1xf32>
    %20 = vector.broadcast %19 : vector<1x4x1xf32> to vector<2x4x256xf32>
    %21 = arith.addf %18, %20 : vector<2x4x256xf32>
    %c0_12 = arith.constant 0 : index
    %c0_13 = arith.constant 0 : index
    %c0_14 = arith.constant 0 : index
    %22 = vector.load %arg4[%c0_12, %c0_13, %c0_14] : memref<2x4x256xf32, #tpu.memory_space<vmem>>, vector<2x4x256xf32>
    tpu.vector_store %arg4[%c0_12, %c0_13, %c0_14], %21 {strides = array<i32>} : memref<2x4x256xf32, #tpu.memory_space<vmem>>, vector<2x4x256xf32>,
    return
  }
  func.func @transform_0(%arg0: i32) -> (i32, i32, i32) {
    %c0_i32 = arith.constant 0 : i32
    %c0_i32_0 = arith.constant 0 : i32
    %c0_i32_1 = arith.constant 0 : i32
    return %c0_i32, %arg0, %c0_i32_0 : i32, i32, i32
  }
  func.func @transform_1(%arg0: i32) -> (i32, i32, i32) {
    %c0_i32 = arith.constant 0 : i32
    %c0_i32_0 = arith.constant 0 : i32
    %c0_i32_1 = arith.constant 0 : i32
    return %c0_i32, %arg0, %c0_i32_0 : i32, i32, i32
  }
  func.func @transform_2(%arg0: i32) -> (i32, i32, i32) {
    %c0_i32 = arith.constant 0 : i32
    %c0_i32_0 = arith.constant 0 : i32
    %c0_i32_1 = arith.constant 0 : i32
    return %c0_i32, %arg0, %c0_i32_0 : i32, i32, i32
  }
  func.func @transform_3(%arg0: i32) -> (i32, i32, i32) {
    %c0_i32 = arith.constant 0 : i32
    %c0_i32_0 = arith.constant 0 : i32
    %c0_i32_1 = arith.constant 0 : i32
    return %c0_i32, %arg0, %c0_i32_0 : i32, i32, i32
  }
}

</mosaic_0001>

<llo_original>
// kernel: tpu_custom_call.1
$region0: #{tpu_custom_call.1}
  #allocation0 [shape = 'u32[]', space=smem, size = 0x4, offset = 0x4, fixed_abs, tag = 'smem constant byte address 0x4 - core index']
  #allocation1 [shape = 'u32[144,128]{1,0:T(1,128)}', space=vmem, size = 0x12000, scoped, tag = 'internal scratch']
  %s0 = inlined_call_operand.hbm [shape: f32[2,4,256], index: 0, kind: input, shape index: {}]
  %s1 = inlined_call_operand.vmem [shape: f32[1,4,1], index: 1, kind: input, shape index: {}]
  %s2 = inlined_call_operand.vmem [shape: f32[1,4,1], index: 2, kind: input, shape index: {}]
  %s3 = inlined_call_operand.hbm [shape: f32[2,4,256], index: 3, kind: output, shape index: {}]
  %s4 = sld [smem:[#allocation0]]
  $region26: #{tpu_custom_call.1} parent=0
    _
  %s6 = ssub.s32 1, %s4
  %s7 = scalar_select 0, %s6, %s4
  $region1: #{tpu_custom_call.1} parent=0
    #allocation2 [shape = 'u8[8192]{0}', space=vmem, size = 0x2000, scoped, tag = 'input window, operand 0, single buffered']
    #allocation3 [shape = 's32[1]{0}', space=sflag, size = 0x4, scoped, tag = 'scoped memory for tpu_custom_call.1']
    #allocation4 [shape = 's32[1]{0}', space=sflag, size = 0x4, scoped, tag = 'scoped memory for tpu_custom_call.1']
    #allocation5 [shape = 'u8[8192]{0}', space=vmem, size = 0x2000, scoped, tag = 'output window, operand 0, single buffered']
    %8 = vsyncpa [#allocation3], 0
    %9 = vsyncpa [#allocation4], 0
    // Predicated region
    $region2: #{tpu_custom_call.1} parent=1 // pred_check
      _
    $region3: #{tpu_custom_call.1} parent=1 // pred_check_branch
      %11 = sbr.rel (0) target = $region5
    $region4: #{tpu_custom_call.1} parent=1 // pred_region
      %s13 = ssub.s32 256, 256
      %14 = vsyncadd [#allocation3], %s13
      %s15 = sshll.u32 [#allocation2], 4
      %s16 = int_to_ptr.vmem [resolvable:$true] %s15
      %21 = dma.hbm_to_vmem [thread:$0]  %s0, 256, %s16, [#allocation3], 128, 128, 8
    $region5: #{tpu_custom_call.1} parent=1 // pred_fallthru
      _
    // Predicated region
    $region6: #{tpu_custom_call.1} parent=1 // pred_check
      _
    $region7: #{tpu_custom_call.1} parent=1 // pred_check_branch
      %23 = sbr.rel (0) target = $region9
    $region8: #{tpu_custom_call.1} parent=1 // pred_region
      _
    $region9: #{tpu_custom_call.1} parent=1 // pred_fallthru
      _
    // Predicated region
    $region10: #{tpu_custom_call.1} parent=1 // pred_check
      _
    $region11: #{tpu_custom_call.1} parent=1 // pred_check_branch
      %25 = sbr.rel (0) target = $region13
    $region12: #{tpu_custom_call.1} parent=1 // pred_region
      _
    $region13: #{tpu_custom_call.1} parent=1 // pred_fallthru
      _
    // Predicated region
    $region14: #{tpu_custom_call.1} parent=1 // pred_check
      _
    $region15: #{tpu_custom_call.1} parent=1 // pred_check_branch
      %27 = sbr.rel (0) target = $region17
    $region16: #{tpu_custom_call.1} parent=1 // pred_region
      %28 = dma.done [#allocation3], 256
    $region17: #{tpu_custom_call.1} parent=1 // pred_fallthru
      _
    %v29 = vld [vmem:[#allocation2] sm:$0xff]
    %v30 = vld [vmem:[#allocation2 + $0x8] sm:$0xff]
    %v33 = vcombine.high %v29, %v29
    %v34 = vcombine.high %v30, %v30
    %vm37 = vcmask 1043456
    %v38 = vsel %vm37, %v29, 0.0
    %v39 = vsel %vm37, %v33, 0.0
    %v40 = vadd.f32 %v38, %v39
    %v41 = vsel %vm37, %v30, 0.0
    %v42 = vadd.f32 %v40, %v41
    %v43 = vsel %vm37, %v34, 0.0
    %v44 = vadd.f32 %v42, %v43
    %45 = vadd.xlane.f32.xlu0 %v44
    %v46 = vpop.xlane.xlu0 %45
    %v47 = vmul.f32 %v46, 0.001953125
    %v50 = vunpack.c.l.s4 839922192
    %v51 = vunpack.c.0.s8 %v50
    %v52 = vlaneseq
    %v53 = vshrl.u32 %v52, 7
    %v54 = vsub.s32 %v51, %v53
    %v55 = vrot.slane %v47, %v54
    %v57 = vsub.f32 %v29, %v55
    %v58 = vsub.f32 %v30, %v55
    %v59 = vmul.f32 %v57, %v57
    %v60 = vmul.f32 %v58, %v58
    %v63 = vcombine.high %v59, %v59
    %v64 = vcombine.high %v60, %v60
    %v67 = vsel %vm37, %v59, 0.0
    %v68 = vsel %vm37, %v63, 0.0
    %v69 = vadd.f32 %v67, %v68
    %v70 = vsel %vm37, %v60, 0.0
    %v71 = vadd.f32 %v69, %v70
    %v72 = vsel %vm37, %v64, 0.0
    %v73 = vadd.f32 %v71, %v72
    %74 = vadd.xlane.f32.xlu0 %v73
    %v75 = vpop.xlane.xlu0 %74
    %v76 = vmul.f32 %v75, 0.001953125
    %v77 = vadd.f32 %v76, 1e-05
    %v78 = vrsqrt.pop %v77
    %v79 = vld [vmem:[%s1] sm:$0xf]
    %v80 = vmul.f32 %v79, %v78
    %82 = vset.pattern.permute.xlu0 0
    %83 = vperm.xlu0 %82, %v80
    %v84 = vpop.permute.xlu0 %83
    %v86 = vunpack.c.l.s4 839922192
    %v87 = vunpack.c.0.s8 %v86
    %v88 = vlaneseq
    %v89 = vshrl.u32 %v88, 7
    %v90 = vsub.s32 %v87, %v89
    %v91 = vrot.slane %v84, %v90
    %v93 = vmul.f32 %v57, %v91
    %v94 = vmul.f32 %v58, %v91
    %v95 = vld [vmem:[%s2] sm:$0xf]
    %97 = vset.pattern.permute.xlu0 0
    %98 = vperm.xlu0 %97, %v95
    %v99 = vpop.permute.xlu0 %98
    %v101 = vunpack.c.l.s4 839922192
    %v102 = vunpack.c.0.s8 %v101
    %v103 = vlaneseq
    %v104 = vshrl.u32 %v103, 7
    %v105 = vsub.s32 %v102, %v104
    %v106 = vrot.slane %v99, %v105
    %v108 = vadd.f32 %v93, %v106
    %v109 = vadd.f32 %v94, %v106
    %110 = vst [vmem:[#allocation5] sm:$0xff] %v108
    %111 = vst [vmem:[#allocation5 + $0x8] sm:$0xff] %v109
    // Predicated region
    $region18: #{tpu_custom_call.1} parent=1 // pred_check
      _
    $region19: #{tpu_custom_call.1} parent=1 // pred_check_branch
      %113 = sbr.rel (0) target = $region21
    $region20: #{tpu_custom_call.1} parent=1 // pred_region
      %s115 = ssub.s32 256, 256
      %116 = vsyncadd [#allocation4], %s115
      %s117 = sshll.u32 [#allocation5], 4
      %s118 = int_to_ptr.vmem [resolvable:$true] %s117
      %123 = dma.vmem_to_hbm [thread:$0]  %s118, 256, %s3, [#allocation4], 128, 128, 8
    $region21: #{tpu_custom_call.1} parent=1 // pred_fallthru
      _
    // Predicated region
    $region22: #{tpu_custom_call.1} parent=1 // pred_check
      _
    $region23: #{tpu_custom_call.1} parent=1 // pred_check_branch
      %125 = sbr.rel (0) target = $region25
    $region24: #{tpu_custom_call.1} parent=1 // pred_region
      %126 = dma.done [#allocation4], 256
    $region25: #{tpu_custom_call.1} parent=1 // pred_fallthru
      _
    %127 = vsyncpa [#allocation3], 1
    %128 = vsyncpa [#allocation4], 1

</llo_original>
